<compile_context>
chip_gen: v7x
topology: tpu7x:2x2x1
jax: 0.10.0
libtpu: 0.0.40
codegen_flags: <defaults>
</compile_context>

<pallas_src>
import functools

import jax
import jax.numpy as jnp
from jax import lax
from jax.experimental import pallas as pl
from jax.experimental.pallas import tpu as pltpu

EPS = 1e-5
_LANES = 128


@functools.lru_cache(maxsize=None)
def _num_tensorcores() -> int:
    """Best-effort TensorCore count a "parallel" grid axis can shard over."""
    try:
        dev = jax.devices()[0]
        if dev.platform != "tpu":
            return 1
        kind = dev.device_kind.lower()
        # v4 / v5p (megacore) and v7x expose 2 TensorCores per chip; v5e / v6e
        # have one, where a 2-way split only adds a wasted phantom-block DMA.
        if "v4" in kind or "v5p" in kind or "7" in kind:
            return 2
    except Exception:
        pass
    return 1


def _dice_partial_kernel(pred_ref, tar_ref, inter_ref, union_ref, *,
                         g, gc, block_rows, sub, last_rows):
    """Accumulate per-core partial sums of p*t and p+t into (sub,128) slabs."""
    c = pl.program_id(0)          # TensorCore split   ("parallel")
    i = pl.program_id(1)          # reduction steps    ("arbitrary")
    blk = c * gc + i              # global block index

    @pl.when(i == 0)
    def _init():
        inter_ref[...] = jnp.zeros_like(inter_ref)
        union_ref[...] = jnp.zeros_like(union_ref)

    def accumulate(n_rows):
        # n_rows is a static Python int and always a multiple of `sub`, so the
        # loop has no remainder and needs no element masking.
        n_chunks = n_rows // sub

        def body(j, carry):
            it, un = carry
            r0 = pl.multiple_of(j * sub, sub)          # tile-aligned offset
            p = pred_ref[pl.ds(r0, sub), :].astype(jnp.float32)
            t = tar_ref[pl.ds(r0, sub), :].astype(jnp.float32)
            return it + p * t, un + (p + t)

        init = (jnp.zeros((sub, _LANES), jnp.float32),
                jnp.zeros((sub, _LANES), jnp.float32))
        it, un = lax.fori_loop(0, n_chunks, body, init,
                               unroll=min(8, n_chunks))
        inter_ref[...] += it
        union_ref[...] += un

    # Full blocks take the unmasked path; only the statically shorter last
    # block runs a shorter loop.  Phantom blocks (clamped index map on the
    # second core when g is odd) satisfy neither condition and are skipped.
    n_full = g if last_rows == block_rows else g - 1
    if n_full > 0:
        @pl.when(blk < n_full)
        def _full_blocks():
            accumulate(block_rows)
    if last_rows != block_rows:
        @pl.when(blk == g - 1)
        def _ragged_last_block():
            accumulate(last_rows)


@functools.partial(jax.jit, static_argnames=("block_bytes",))
def dice_loss(predict, target, *, block_bytes=4 * 1024 * 1024):
    assert predict.shape == target.shape, (
        "the size of predict and target must be equal.")

    flat_p = predict.reshape(-1)
    flat_t = target.reshape(-1)
    n = flat_p.shape[0]

    # Rows per fully packed vreg chunk: 8 for 32-bit, 16 for bf16, 32 for int8.
    # Use the narrowest input dtype so chunk offsets stay tile-aligned for both.
    min_itemsize = min(predict.dtype.itemsize, target.dtype.itemsize)
    sub = 8 * max(1, 4 // min_itemsize)

    rows = n // _LANES
    body_rows = (rows // sub) * sub          # rows handled by the kernel
    body = body_rows * _LANES                # elements handled by the kernel

    inter = jnp.float32(0.0)
    union = jnp.float32(0.0)

    if body_rows > 0:
        p2 = flat_p[:body].reshape(body_rows, _LANES)
        t2 = flat_t[:body].reshape(body_rows, _LANES)

        # ~block_bytes per input per buffer (default 4 MiB); with 2 inputs
        # double-buffered that is ~16 MiB, under the explicit 32 MiB limit on
        # every generation (v5e/v6e/v7x).  Always a multiple of `sub`.
        max_itemsize = max(predict.dtype.itemsize, target.dtype.itemsize)
        block_rows = (block_bytes // (_LANES * max_itemsize)) // sub * sub
        block_rows = max(sub, min(block_rows, body_rows))

        g = pl.cdiv(body_rows, block_rows)               # number of blocks
        last_rows = body_rows - (g - 1) * block_rows     # static, multiple of sub

        ncores = min(_num_tensorcores(), g)              # device-aware split
        gc = pl.cdiv(g, ncores)                          # blocks per core
        needs_clamp = ncores * gc > g                    # phantom block exists

        if needs_clamp:
            def in_map(c, i):
                return (jnp.minimum(c * gc + i, g - 1), 0)
        else:
            def in_map(c, i):
                return (c * gc + i, 0)

        kernel = functools.partial(
            _dice_partial_kernel, g=g, gc=gc, block_rows=block_rows,
            sub=sub, last_rows=last_rows)

        inter_parts, union_parts = pl.pallas_call(
            kernel,
            out_shape=(
                jax.ShapeDtypeStruct((ncores, sub, _LANES), jnp.float32),
                jax.ShapeDtypeStruct((ncores, sub, _LANES), jnp.float32),
            ),
            grid_spec=pltpu.PrefetchScalarGridSpec(
                num_scalar_prefetch=0,
                grid=(ncores, gc),
                in_specs=[
                    pl.BlockSpec((block_rows, _LANES), in_map),
                    pl.BlockSpec((block_rows, _LANES), in_map),
                ],
                out_specs=[
                    pl.BlockSpec((None, sub, _LANES), lambda c, i: (c, 0, 0)),
                    pl.BlockSpec((None, sub, _LANES), lambda c, i: (c, 0, 0)),
                ],
            ),
            compiler_params=pltpu.CompilerParams(
                dimension_semantics=("parallel", "arbitrary"),
                vmem_limit_bytes=32 * 1024 * 1024,
            ),
        )(p2, t2)

        inter = inter + jnp.sum(inter_parts)
        union = union + jnp.sum(union_parts)

    if body < n:
        # Sub-chunk tail (< sub*128 elements): tiny fused wrapper-side sums —
        # replaces the old full-array jnp.pad (no extra HBM pass over inputs).
        tail_p = flat_p[body:].astype(jnp.float32)
        tail_t = flat_t[body:].astype(jnp.float32)
        inter = inter + jnp.sum(tail_p * tail_t)
        union = union + jnp.sum(tail_p) + jnp.sum(tail_t)

    return 1.0 - 2.0 * (inter + EPS) / (union + EPS)


def dice_loss_ref(predict, target):
    num = predict.shape[0]
    pre = predict.reshape(num, -1).astype(jnp.float32)
    tar = target.reshape(num, -1).astype(jnp.float32)
    intersection = (pre * tar).sum(-1).sum()
    union = (pre + tar).sum(-1).sum()
    return 1.0 - 2.0 * (intersection + EPS) / (union + EPS)


if __name__ == "__main__":
    key = jax.random.PRNGKey(0)
    k1, k2, k3, k4, k5, k6, k7, k8 = jax.random.split(key, 8)

    # Primary case: small NCHW segmentation prediction/target pair (aligned).
    p1 = jax.nn.sigmoid(jax.random.normal(k1, (2, 4, 16, 16), jnp.float32))
    t1 = (jax.random.uniform(k2, (2, 4, 16, 16)) > 0.5).astype(jnp.float32)
    s1 = jax.block_until_ready(dice_loss(p1, t1))
    r1 = dice_loss_ref(p1, t1)
    assert jnp.allclose(s1, r1, rtol=1e-4, atol=1e-4), (s1, r1)

    # Ragged case: element count not a multiple of 128 — exercises the
    # wrapper-side tail (no padding of the inputs anywhere).
    p2 = jax.nn.sigmoid(jax.random.normal(k3, (2, 3, 37, 23), jnp.float32))
    t2 = (jax.random.uniform(k4, (2, 3, 37, 23)) > 0.5).astype(jnp.float32)
    s2 = jax.block_until_ready(dice_loss(p2, t2))
    r2 = dice_loss_ref(p2, t2)
    assert jnp.allclose(s2, r2, rtol=1e-4, atol=1e-4), (s2, r2)

    # Multi-block case with a statically ragged last block (tiny block_bytes
    # to force several grid steps and the shorter last-block path).
    p3 = jax.nn.sigmoid(jax.random.normal(k5, (2, 4, 40, 40), jnp.float32))
    t3 = (jax.random.uniform(k6, (2, 4, 40, 40)) > 0.5).astype(jnp.float32)
    s3 = jax.block_until_ready(dice_loss(p3, t3, block_bytes=40 * 128 * 4))
    r3 = dice_loss_ref(p3, t3)
    assert jnp.allclose(s3, r3, rtol=1e-4, atol=1e-4), (s3, r3)

    # bf16 streaming: exercises the dtype-dependent (16, 128) chunk packing.
    p4 = jax.nn.sigmoid(
        jax.random.normal(k7, (2, 4, 32, 32), jnp.float32)).astype(jnp.bfloat16)
    t4 = (jax.random.uniform(k8, (2, 4, 32, 32)) > 0.5).astype(jnp.bfloat16)
    s4 = jax.block_until_ready(dice_loss(p4, t4))
    r4 = dice_loss_ref(p4, t4)
    assert jnp.allclose(s4, r4, rtol=2e-3, atol=2e-3), (s4, r4)

    print("KERNEL_OK")
</pallas_src>

<mosaic_0001>
module attributes {stable_mosaic.version = 11 : i64} {
  func.func @_dice_partial_kernel(%arg0: i32, %arg1: i32, %arg2: memref<16x128xf32, #tpu.memory_space<vmem>>, %arg3: memref<16x128xf32, #tpu.memory_space<vmem>>, %arg4: memref<1x8x128xf32, #tpu.memory_space<vmem>>, %arg5: memref<1x8x128xf32, #tpu.memory_space<vmem>>) attributes {dimension_semantics = [#tpu.dimension_semantics<parallel>, #tpu.dimension_semantics<arbitrary>], iteration_bounds = array<i64: 1, 1>, scalar_prefetch = 0 : i64, scratch_operands = 0 : i64, tpu.core_type = #tpu.core_type<tc>, window_params = [{transform_indices = @transform_0, window_bounds = array<i64: 16, 128>}, {transform_indices = @transform_1, window_bounds = array<i64: 16, 128>}, {transform_indices = @transform_2, window_bounds = array<i64: 1, 8, 128>}, {transform_indices = @transform_3, window_bounds = array<i64: 1, 8, 128>}]} {
    %c1_i32 = arith.constant 1 : i32
    %0 = arith.muli %arg0, %c1_i32 : i32
    %1 = arith.addi %0, %arg1 : i32
    %c0_i32 = arith.constant 0 : i32
    %2 = arith.cmpi eq, %arg1, %c0_i32 : i32
    %3 = arith.extui %2 : i1 to i32
    %c0_i32_0 = arith.constant 0 : i32
    %4 = arith.cmpi ne, %3, %c0_i32_0 : i32
    scf.if %4 {
      %cst = arith.constant 0.000000e+00 : f32
      %8 = vector.broadcast %cst : f32 to vector<8x128xf32>
      %c0 = arith.constant 0 : index
      %c0_3 = arith.constant 0 : index
      %c0_4 = arith.constant 0 : index
      %9 = vector.load %arg4[%c0, %c0_3, %c0_4] : memref<1x8x128xf32, #tpu.memory_space<vmem>>, vector<1x8x128xf32>
      %10 = vector.shape_cast %9 : vector<1x8x128xf32> to vector<8x128xf32>
      %11 = vector.shape_cast %8 : vector<8x128xf32> to vector<1x8x128xf32>
      tpu.vector_store %arg4[%c0, %c0_3, %c0_4], %11 {strides = array<i32>} : memref<1x8x128xf32, #tpu.memory_space<vmem>>, vector<1x8x128xf32>,
      %cst_5 = arith.constant 0.000000e+00 : f32
      %12 = vector.broadcast %cst_5 : f32 to vector<8x128xf32>
      %c0_6 = arith.constant 0 : index
      %c0_7 = arith.constant 0 : index
      %c0_8 = arith.constant 0 : index
      %13 = vector.load %arg5[%c0_6, %c0_7, %c0_8] : memref<1x8x128xf32, #tpu.memory_space<vmem>>, vector<1x8x128xf32>
      %14 = vector.shape_cast %13 : vector<1x8x128xf32> to vector<8x128xf32>
      %15 = vector.shape_cast %12 : vector<8x128xf32> to vector<1x8x128xf32>
      tpu.vector_store %arg5[%c0_6, %c0_7, %c0_8], %15 {strides = array<i32>} : memref<1x8x128xf32, #tpu.memory_space<vmem>>, vector<1x8x128xf32>,
    } else {
    }
    %c1_i32_1 = arith.constant 1 : i32
    %5 = arith.cmpi slt, %1, %c1_i32_1 : i32
    %6 = arith.extui %5 : i1 to i32
    %c0_i32_2 = arith.constant 0 : i32
    %7 = arith.cmpi ne, %6, %c0_i32_2 : i32
    scf.if %7 {
      %cst = arith.constant 0.000000e+00 : f32
      %8 = vector.broadcast %cst : f32 to vector<8x128xf32>
      %cst_3 = arith.constant 0.000000e+00 : f32
      %9 = vector.broadcast %cst_3 : f32 to vector<8x128xf32>
      %c0_i32_4 = arith.constant 0 : i32
      %c8_i32 = arith.constant 8 : i32
      %10 = arith.muli %c0_i32_4, %c8_i32 : i32
      %11 = tpu.assume_multiple %10, 8 : i32
      %12 = arith.index_cast %11 : i32 to index
      %c0 = arith.constant 0 : index
      %13 = vector.load %arg2[%12, %c0] : memref<16x128xf32, #tpu.memory_space<vmem>>, vector<8x128xf32>
      %14 = arith.index_cast %11 : i32 to index
      %c0_5 = arith.constant 0 : index
      %15 = vector.load %arg3[%14, %c0_5] : memref<16x128xf32, #tpu.memory_space<vmem>>, vector<8x128xf32>
      %16 = arith.mulf %13, %15 : vector<8x128xf32>
      %17 = arith.addf %8, %16 : vector<8x128xf32>
      %18 = arith.addf %13, %15 : vector<8x128xf32>
      %19 = arith.addf %9, %18 : vector<8x128xf32>
      %c1_i32_6 = arith.constant 1 : i32
      %c8_i32_7 = arith.constant 8 : i32
      %20 = arith.muli %c1_i32_6, %c8_i32_7 : i32
      %21 = tpu.assume_multiple %20, 8 : i32
      %22 = arith.index_cast %21 : i32 to index
      %c0_8 = arith.constant 0 : index
      %23 = vector.load %arg2[%22, %c0_8] : memref<16x128xf32, #tpu.memory_space<vmem>>, vector<8x128xf32>
      %24 = arith.index_cast %21 : i32 to index
      %c0_9 = arith.constant 0 : index
      %25 = vector.load %arg3[%24, %c0_9] : memref<16x128xf32, #tpu.memory_space<vmem>>, vector<8x128xf32>
      %26 = arith.mulf %23, %25 : vector<8x128xf32>
      %27 = arith.addf %17, %26 : vector<8x128xf32>
      %28 = arith.addf %23, %25 : vector<8x128xf32>
      %29 = arith.addf %19, %28 : vector<8x128xf32>
      %c2_i32 = arith.constant 2 : i32
      %c0_10 = arith.constant 0 : index
      %c0_11 = arith.constant 0 : index
      %c0_12 = arith.constant 0 : index
      %30 = vector.load %arg4[%c0_10, %c0_11, %c0_12] : memref<1x8x128xf32, #tpu.memory_space<vmem>>, vector<1x8x128xf32>
      %31 = vector.shape_cast %30 : vector<1x8x128xf32> to vector<8x128xf32>
      %32 = arith.addf %31, %27 : vector<8x128xf32>
      %c0_13 = arith.constant 0 : index
      %c0_14 = arith.constant 0 : index
      %c0_15 = arith.constant 0 : index
      %33 = vector.load %arg4[%c0_13, %c0_14, %c0_15] : memref<1x8x128xf32, #tpu.memory_space<vmem>>, vector<1x8x128xf32>
      %34 = vector.shape_cast %33 : vector<1x8x128xf32> to vector<8x128xf32>
      %35 = vector.shape_cast %32 : vector<8x128xf32> to vector<1x8x128xf32>
      tpu.vector_store %arg4[%c0_13, %c0_14, %c0_15], %35 {strides = array<i32>} : memref<1x8x128xf32, #tpu.memory_space<vmem>>, vector<1x8x128xf32>,
      %c0_16 = arith.constant 0 : index
      %c0_17 = arith.constant 0 : index
      %c0_18 = arith.constant 0 : index
      %36 = vector.load %arg5[%c0_16, %c0_17, %c0_18] : memref<1x8x128xf32, #tpu.memory_space<vmem>>, vector<1x8x128xf32>
      %37 = vector.shape_cast %36 : vector<1x8x128xf32> to vector<8x128xf32>
      %38 = arith.addf %37, %29 : vector<8x128xf32>
      %c0_19 = arith.constant 0 : index
      %c0_20 = arith.constant 0 : index
      %c0_21 = arith.constant 0 : index
      %39 = vector.load %arg5[%c0_19, %c0_20, %c0_21] : memref<1x8x128xf32, #tpu.memory_space<vmem>>, vector<1x8x128xf32>
      %40 = vector.shape_cast %39 : vector<1x8x128xf32> to vector<8x128xf32>
      %41 = vector.shape_cast %38 : vector<8x128xf32> to vector<1x8x128xf32>
      tpu.vector_store %arg5[%c0_19, %c0_20, %c0_21], %41 {strides = array<i32>} : memref<1x8x128xf32, #tpu.memory_space<vmem>>, vector<1x8x128xf32>,
    } else {
    }
    return
  }
  func.func @transform_0(%arg0: i32, %arg1: i32) -> (i32, i32) {
    %c1_i32 = arith.constant 1 : i32
    %0 = arith.muli %arg0, %c1_i32 : i32
    %1 = arith.addi %0, %arg1 : i32
    %c0_i32 = arith.constant 0 : i32
    %c0_i32_0 = arith.constant 0 : i32
    return %1, %c0_i32 : i32, i32
  }
  func.func @transform_1(%arg0: i32, %arg1: i32) -> (i32, i32) {
    %c1_i32 = arith.constant 1 : i32
    %0 = arith.muli %arg0, %c1_i32 : i32
    %1 = arith.addi %0, %arg1 : i32
    %c0_i32 = arith.constant 0 : i32
    %c0_i32_0 = arith.constant 0 : i32
    return %1, %c0_i32 : i32, i32
  }
  func.func @transform_2(%arg0: i32, %arg1: i32) -> (i32, i32, i32) {
    %c0_i32 = arith.constant 0 : i32
    %c0_i32_0 = arith.constant 0 : i32
    %c0_i32_1 = arith.constant 0 : i32
    return %arg0, %c0_i32, %c0_i32_0 : i32, i32, i32
  }
  func.func @transform_3(%arg0: i32, %arg1: i32) -> (i32, i32, i32) {
    %c0_i32 = arith.constant 0 : i32
    %c0_i32_0 = arith.constant 0 : i32
    %c0_i32_1 = arith.constant 0 : i32
    return %arg0, %c0_i32, %c0_i32_0 : i32, i32, i32
  }
}

</mosaic_0001>

<llo_original>
// kernel: dice_loss.1
$region0: #{dice_loss.1}
  #allocation0 [shape = 'u32[]', space=smem, size = 0x4, offset = 0x4, fixed_abs, tag = 'smem constant byte address 0x4 - core index']
  #allocation1 [shape = 'u32[144,128]{1,0:T(1,128)}', space=vmem, size = 0x12000, scoped, tag = 'internal scratch']
  %s0 = inlined_call_operand.vmem [shape: f32[16,128], index: 0, kind: input, shape index: {}]
  %s1 = inlined_call_operand.vmem [shape: f32[16,128], index: 1, kind: input, shape index: {}]
  %s2 = inlined_call_operand.vmem [shape: f32[1,8,128], index: 2, kind: output, shape index: {0}]
  %s3 = inlined_call_operand.vmem [shape: f32[1,8,128], index: 3, kind: output, shape index: {1}]
  %4 = xla_tuple %s2, %s3
  %s5 = sld [smem:[#allocation0]]
  $region34: #{dice_loss.1} parent=0
    _
  %s7 = ssub.s32 1, %s5
  %s8 = scalar_select 0, %s7, %s5
  // Predicated region
  $region2: #{dice_loss.1} parent=0 // pred_check
    _
  $region3: #{dice_loss.1} parent=0 // pred_check_branch
    %10 = sbr.rel (0) target = $region5
  $region4: #{dice_loss.1} parent=0 // pred_region
    %s11 = sadd.s32 0, 0
    %s12 = smul.u32 2, %s11
    %p13 = scmp.lt.s32.totalorder %s12, 1
    %s14 = scalar_select %p13, %s12, 1
    %s15 = smul.addr %s14, 8
    %s16 = scalar_lea.vmem %s0, %s15
    %s17 = sadd.s32 0, 0
    %s18 = smul.u32 2, %s17
  $region5: #{dice_loss.1} parent=0 // pred_fallthru
    _
  // Predicated region
  $region6: #{dice_loss.1} parent=0 // pred_check
    _
  $region7: #{dice_loss.1} parent=0 // pred_check_branch
    %20 = sbr.rel (0) target = $region9
  $region8: #{dice_loss.1} parent=0 // pred_region
    %s21 = sadd.s32 0, 0
    %s22 = smul.u32 2, %s21
    %p23 = scmp.lt.s32.totalorder %s22, 1
    %s24 = scalar_select %p23, %s22, 1
    %s25 = smul.addr %s24, 8
    %s26 = scalar_lea.vmem %s1, %s25
    %s27 = sadd.s32 0, 0
    %s28 = smul.u32 2, %s27
  $region9: #{dice_loss.1} parent=0 // pred_fallthru
    _
  %s29 = sadd.s32 0, 0
  %s30 = smul.u32 2, %s29
  %p31 = scmp.lt.s32.totalorder %s30, 1
  %s32 = scalar_select %p31, %s30, 1
  %s33 = smul.addr %s32, 8
  %s34 = scalar_lea.vmem %s0, %s33
  %s35 = sadd.s32 0, 0
  %s36 = smul.u32 2, %s35
  %p37 = scmp.lt.s32.totalorder %s36, 1
  %s38 = scalar_select %p37, %s36, 1
  %s39 = smul.addr %s38, 8
  %s40 = scalar_lea.vmem %s1, %s39
  %s41 = sadd.s32 0, 0
  %s42 = smul.u32 2, %s41
  %p43 = scmp.lt.s32.totalorder %s42, 1
  %s44 = scalar_select %p43, %s42, 1
  %s45 = smul.addr %s44, 8
  %s46 = scalar_lea.vmem %s0, %s45
  %s47 = sadd.s32 0, 0
  %s48 = smul.u32 2, %s47
  %s49 = sadd.s32 0, 0
  %s50 = smul.u32 2, %s49
  %p51 = scmp.lt.s32.totalorder %s50, 1
  %s52 = scalar_select %p51, %s50, 1
  %s53 = smul.addr %s52, 8
  %s54 = scalar_lea.vmem %s1, %s53
  %s55 = sadd.s32 0, 0
  %s56 = smul.u32 2, %s55
  %s57 = sadd.s32 0, 0
  %p58 = scmp.eq.s32.totalorder 0, 0
  // Predicated region
  $region10: #{dice_loss.1} parent=0 // pred_check
    %p59 = pneg %p58
  $region11: #{dice_loss.1} parent=0 // pred_check_branch
    %61 = sbr.rel (%p59) target = $region13
  $region12: #{dice_loss.1} parent=0 // pred_region
    %62 = vst [vmem:[%s2] sm:$0xff] 0.0
    %63 = vst [vmem:[%s3] sm:$0xff] 0.0
  $region13: #{dice_loss.1} parent=0 // pred_fallthru
    _
  %p64 = scmp.lt.s32.totalorder %s57, 1
  // Predicated region
  $region14: #{dice_loss.1} parent=0 // pred_check
    %p65 = pneg %p64
  $region15: #{dice_loss.1} parent=0 // pred_check_branch
    %67 = sbr.rel (%p65) target = $region17
  $region16: #{dice_loss.1} parent=0 // pred_region
    %v68 = vld [vmem:[%s46] sm:$0xff]
    %v69 = vld [vmem:[%s54] sm:$0xff]
    %v70 = vmul.f32 %v68, %v69
    %v71 = vadd.f32 %v70, 0.0
    %v72 = vadd.f32 %v68, %v69
    %v73 = vadd.f32 %v72, 0.0
    %s74 = scalar_lea.vmem %s46, 8
    %v75 = vld [vmem:[%s74] sm:$0xff]
    %s76 = scalar_lea.vmem %s54, 8
    %v77 = vld [vmem:[%s76] sm:$0xff]
    %v78 = vmul.f32 %v75, %v77
    %v79 = vadd.f32 %v71, %v78
    %v80 = vadd.f32 %v75, %v77
    %v81 = vadd.f32 %v73, %v80
    %v82 = vld [vmem:[%s2] sm:$0xff]
    %v83 = vadd.f32 %v82, %v79
    %84 = vst [vmem:[%s2] sm:$0xff] %v83
    %v85 = vld [vmem:[%s3] sm:$0xff]
    %v86 = vadd.f32 %v85, %v81
    %87 = vst [vmem:[%s3] sm:$0xff] %v86
  $region17: #{dice_loss.1} parent=0 // pred_fallthru
    _
  // Predicated region
  $region18: #{dice_loss.1} parent=0 // pred_check
    _
  $region19: #{dice_loss.1} parent=0 // pred_check_branch
    %89 = sbr.rel (0) target = $region21
  $region20: #{dice_loss.1} parent=0 // pred_region
    _
  $region21: #{dice_loss.1} parent=0 // pred_fallthru
    _
  // Predicated region
  $region22: #{dice_loss.1} parent=0 // pred_check
    _
  $region23: #{dice_loss.1} parent=0 // pred_check_branch
    %91 = sbr.rel (0) target = $region25
  $region24: #{dice_loss.1} parent=0 // pred_region
    _
  $region25: #{dice_loss.1} parent=0 // pred_fallthru
    _
  // Predicated region
  $region26: #{dice_loss.1} parent=0 // pred_check
    _
  $region27: #{dice_loss.1} parent=0 // pred_check_branch
    %93 = sbr.rel (0) target = $region29
  $region28: #{dice_loss.1} parent=0 // pred_region
    _
  $region29: #{dice_loss.1} parent=0 // pred_fallthru
    _
  // Predicated region
  $region30: #{dice_loss.1} parent=0 // pred_check
    _
  $region31: #{dice_loss.1} parent=0 // pred_check_branch
    %95 = sbr.rel (0) target = $region33
  $region32: #{dice_loss.1} parent=0 // pred_region
    _
  $region33: #{dice_loss.1} parent=0 // pred_fallthru
    _

</llo_original>
